<compile_context>
chip_gen: v5e
topology: v5e:2x2
jax: 0.10.0
libtpu: 0.0.40
codegen_flags: <defaults>
</compile_context>

<pallas_src>
import jax
import jax.numpy as jnp
from jax.experimental import pallas as pl
from jax.experimental.pallas import tpu as pltpu


def _round_up(a, b):
    return -(-a // b) * b


def _tpu_vmem_bytes():
    """Physical VMEM per TensorCore; conservative 64 MiB if query fails."""
    try:
        cap = int(getattr(pltpu.get_tpu_info(), "vmem_capacity_bytes", 0))
        if cap > 0:
            return cap
    except Exception:
        pass
    return 64 * 1024 * 1024


def _choose_tf(d_ff, tf_max):
    """Pick the d_ff reduction tile. Prefer multiples of 128 that divide d_ff
    (no weight padding); fall back to padding d_ff only if unavoidable."""
    if d_ff <= tf_max:
        return d_ff, d_ff
    t = (tf_max // 128) * 128
    while t >= 128:
        if d_ff % t == 0:
            return t, d_ff
        t -= 128
    tf = max(128, (tf_max // 128) * 128)
    return tf, _round_up(d_ff, tf)


def _fits(tm, tf, d_model, bytes_c, bytes_o, use_acc, budget):
    """Double-buffered VMEM working set for one grid step."""
    fp = 2 * tm * d_model * bytes_c          # x block (buffered)
    fp += 2 * d_model * tf * bytes_c         # w1 block (buffered)
    fp += 2 * tf * d_model * bytes_c         # w2 block (buffered)
    fp += 2 * tm * d_model * bytes_o         # output block (buffered)
    fp += 2 * 8 * (tf + d_model) * 4         # biases (sublane padded, tiny)
    if use_acc:
        fp += tm * d_model * 4               # f32 accumulator scratch
    return fp <= budget


def _partial_ffn(x_ref, w1_ref, b1_ref, w2_ref):
    """relu(x @ w1_k + b1_k) @ w2_k for the current d_ff slice, in f32."""
    h = jnp.dot(x_ref[...], w1_ref[...], preferred_element_type=jnp.float32)
    h = h + b1_ref[...].astype(jnp.float32)
    h = jnp.maximum(h, 0.0)
    return jnp.dot(h.astype(w2_ref.dtype), w2_ref[...],
                   preferred_element_type=jnp.float32)


def _ffn_kernel_inplace(x_ref, w1_ref, b1_ref, w2_ref, b2_ref, o_ref):
    """f32 output: accumulate directly into the resident output block."""
    k = pl.program_id(1)
    part = _partial_ffn(x_ref, w1_ref, b1_ref, w2_ref)

    @pl.when(k == 0)
    def _():
        o_ref[...] = part + b2_ref[...].astype(jnp.float32)

    @pl.when(k != 0)
    def _():
        o_ref[...] += part


def _ffn_kernel_acc(x_ref, w1_ref, b1_ref, w2_ref, b2_ref, o_ref, acc_ref):
    """Non-f32 output: f32 accumulator scratch, cast on the last k step."""
    k = pl.program_id(1)
    part = _partial_ffn(x_ref, w1_ref, b1_ref, w2_ref)

    @pl.when(k == 0)
    def _():
        acc_ref[...] = part + b2_ref[...].astype(jnp.float32)

    @pl.when(k != 0)
    def _():
        acc_ref[...] += part

    @pl.when(k == pl.num_programs(1) - 1)
    def _():
        o_ref[...] = acc_ref[...].astype(o_ref.dtype)


def feed_forward(x, w1, b1, w2, b2, *, tm=None, tf=None,
                 compute_dtype=jnp.bfloat16):
    """x: (..., d_model); w1: (d_model, d_ff); b1: (d_ff,)/(1, d_ff);
       w2: (d_ff, d_model); b2: (d_model,)/(1, d_model)."""
    orig_shape = x.shape
    out_dtype = x.dtype
    d_model = orig_shape[-1]
    d_ff = w1.shape[1]

    b1 = b1.reshape(1, -1).astype(jnp.float32)
    b2 = b2.reshape(1, -1).astype(jnp.float32)

    x2d = x.reshape(-1, d_model)
    M = x2d.shape[0]

    if compute_dtype is not None:
        # TODO(synk): in real deployments pre-cast weights once at init and
        # reuse; here the per-call cast is a cheap HBM copy at test sizes.
        x2d = x2d.astype(compute_dtype)
        w1 = w1.astype(compute_dtype)
        w2 = w2.astype(compute_dtype)

    bytes_c = jnp.dtype(x2d.dtype).itemsize
    bytes_o = jnp.dtype(out_dtype).itemsize
    use_acc = (out_dtype != jnp.float32)

    vmem_cap = _tpu_vmem_bytes()
    budget = int(vmem_cap * 0.72)                 # tile working-set budget
    vmem_limit = int(vmem_cap * 0.82)             # Mosaic scoped-VMEM limit
    small_vmem = vmem_cap <= 72 * 1024 * 1024     # v7x-like: 64 MiB, 2 TCs

    # ---- row tile: large (amortizes weight streaming), balanced over M ----
    tm_max = (512 if small_vmem else 1024) if tm is None else max(8, tm)
    n_row = max(1, -(-M // tm_max))
    if small_vmem and n_row == 1 and M >= 512:
        n_row = 2                                 # keep both v7x TCs busy
    tm_eff = _round_up(-(-M // n_row), 8)
    M_p = n_row * tm_eff

    # ---- d_ff reduction tile: big, prefer divisors of d_ff (no padding) ----
    tf_max = 1024 if tf is None else max(128, tf)
    tf_eff, d_ff_p = _choose_tf(d_ff, tf_max)

    # Shrink tf (then tm) until the double-buffered working set fits VMEM.
    while (not _fits(tm_eff, tf_eff, d_model, bytes_c, bytes_o, use_acc, budget)
           and tf_eff > 128):
        tf_eff, d_ff_p = _choose_tf(d_ff, max(128, tf_eff // 2))
    while (not _fits(tm_eff, tf_eff, d_model, bytes_c, bytes_o, use_acc, budget)
           and tm_eff > 8):
        tm_eff = max(8, _round_up(tm_eff // 2, 8))
        n_row = -(-M // tm_eff)
        M_p = n_row * tm_eff

    # ---- zero-pad rows / d_ff only when unavoidable ----
    if M_p != M:
        x2d = jnp.pad(x2d, ((0, M_p - M), (0, 0)))
    if d_ff_p != d_ff:
        w1 = jnp.pad(w1, ((0, 0), (0, d_ff_p - d_ff)))
        b1 = jnp.pad(b1, ((0, 0), (0, d_ff_p - d_ff)))
        w2 = jnp.pad(w2, ((0, d_ff_p - d_ff), (0, 0)))

    grid = (M_p // tm_eff, d_ff_p // tf_eff)

    if use_acc:
        kernel = _ffn_kernel_acc
        scratch = [pltpu.VMEM((tm_eff, d_model), jnp.float32)]
    else:
        kernel = _ffn_kernel_inplace
        scratch = []

    out = pl.pallas_call(
        kernel,
        out_shape=jax.ShapeDtypeStruct((M_p, d_model), out_dtype),
        grid_spec=pltpu.PrefetchScalarGridSpec(
            num_scalar_prefetch=0,
            grid=grid,
            in_specs=[
                pl.BlockSpec((tm_eff, d_model), lambda i, k: (i, 0)),  # x rows
                pl.BlockSpec((d_model, tf_eff), lambda i, k: (0, k)),  # w1 k
                pl.BlockSpec((1, tf_eff), lambda i, k: (0, k)),        # b1 k
                pl.BlockSpec((tf_eff, d_model), lambda i, k: (k, 0)),  # w2 k
                pl.BlockSpec((1, d_model), lambda i, k: (0, 0)),       # b2
            ],
            out_specs=pl.BlockSpec((tm_eff, d_model), lambda i, k: (i, 0)),
            scratch_shapes=scratch,
        ),
        compiler_params=pltpu.CompilerParams(
            dimension_semantics=("parallel", "arbitrary"),
            vmem_limit_bytes=vmem_limit,
        ),
    )(x2d, w1, b1, w2, b2)

    return out[:M].reshape(orig_shape)


def reference(x, w1, b1, w2, b2):
    h = jnp.maximum(x @ w1 + b1.reshape(-1), 0.0)
    return h @ w2 + b2.reshape(-1)


if __name__ == "__main__":
    # Small but lane-dense shapes: d_model multiple of 128 keeps stores
    # unmasked; tf=128 forces a 2-step d_ff reduction (accumulation path).
    batch, seq, d_model, d_ff = 2, 8, 128, 256

    key = jax.random.PRNGKey(0)
    kx, kw1, kb1, kw2, kb2 = jax.random.split(key, 5)

    x = jax.random.normal(kx, (batch, seq, d_model), dtype=jnp.float32)

    # PyTorch-Linear-style uniform init, stored transposed vs torch (out, in).
    bound1 = 1.0 / (d_model ** 0.5)
    bound2 = 1.0 / (d_ff ** 0.5)
    w1 = jax.random.uniform(kw1, (d_model, d_ff), jnp.float32, -bound1, bound1)
    b1 = jax.random.uniform(kb1, (d_ff,), jnp.float32, -bound1, bound1)
    w2 = jax.random.uniform(kw2, (d_ff, d_model), jnp.float32, -bound2, bound2)
    b2 = jax.random.uniform(kb2, (d_model,), jnp.float32, -bound2, bound2)

    ref = reference(x.reshape(-1, d_model), w1, b1, w2, b2).reshape(x.shape)

    # 1) Default path: bf16 MXU compute, f32 accumulation directly in the
    #    resident output block; tf=128 forces a 2-step reduction over d_ff.
    out = jax.block_until_ready(feed_forward(x, w1, b1, w2, b2, tf=128))
    assert out.shape == x.shape
    assert jnp.allclose(out, ref, atol=2e-2, rtol=2e-2), float(
        jnp.max(jnp.abs(out - ref)))

    # 2) Full-precision compute path (tight tolerance), single reduction step.
    out_f32 = jax.block_until_ready(
        feed_forward(x, w1, b1, w2, b2, compute_dtype=None))
    assert jnp.allclose(out_f32, ref, atol=2e-4, rtol=2e-4), float(
        jnp.max(jnp.abs(out_f32 - ref)))

    # 3) bf16 output -> exercises the separate f32 accumulator-scratch path.
    out_bf16 = jax.block_until_ready(
        feed_forward(x.astype(jnp.bfloat16), w1, b1, w2, b2, tf=128))
    assert out_bf16.dtype == jnp.bfloat16
    assert jnp.allclose(out_bf16.astype(jnp.float32), ref, atol=6e-2, rtol=6e-2)

    print("KERNEL_OK")
</pallas_src>

<mosaic_0001>
module attributes {stable_mosaic.version = 11 : i64} {
  func.func @_ffn_kernel_inplace(%arg0: i32, %arg1: i32, %arg2: memref<16x128xbf16, #tpu.memory_space<vmem>>, %arg3: memref<128x128xbf16, #tpu.memory_space<vmem>>, %arg4: memref<1x128xf32, #tpu.memory_space<vmem>>, %arg5: memref<128x128xbf16, #tpu.memory_space<vmem>>, %arg6: memref<1x128xf32, #tpu.memory_space<vmem>>, %arg7: memref<16x128xf32, #tpu.memory_space<vmem>>) attributes {dimension_semantics = [#tpu.dimension_semantics<parallel>, #tpu.dimension_semantics<arbitrary>], iteration_bounds = array<i64: 1, 2>, scalar_prefetch = 0 : i64, scratch_operands = 0 : i64, tpu.core_type = #tpu.core_type<tc>, window_params = [{transform_indices = @transform_0, window_bounds = array<i64: 16, 128>}, {transform_indices = @transform_1, window_bounds = array<i64: 128, 128>}, {transform_indices = @transform_2, window_bounds = array<i64: 1, 128>}, {transform_indices = @transform_3, window_bounds = array<i64: 128, 128>}, {pipeline_mode = #tpu.pipeline_mode<synchronous>, transform_indices = @transform_4, window_bounds = array<i64: 1, 128>}, {transform_indices = @transform_5, window_bounds = array<i64: 16, 128>}]} {
    %c0 = arith.constant 0 : index
    %c0_0 = arith.constant 0 : index
    %0 = vector.load %arg2[%c0, %c0_0] : memref<16x128xbf16, #tpu.memory_space<vmem>>, vector<16x128xbf16>
    %c0_1 = arith.constant 0 : index
    %c0_2 = arith.constant 0 : index
    %1 = vector.load %arg3[%c0_1, %c0_2] : memref<128x128xbf16, #tpu.memory_space<vmem>>, vector<128x128xbf16>
    %cst = arith.constant dense<0.000000e+00> : vector<16x128xf32>
    %2 = tpu.matmul %0, %1, %cst {dimension_numbers = #tpu.dot_dimension_numbers<[1], [0], [0], [1], [0, 0, 1, 1], [], []>} : vector<16x128xbf16>, vector<128x128xbf16>, vector<16x128xf32> -> vector<16x128xf32>
    %c0_3 = arith.constant 0 : index
    %c0_4 = arith.constant 0 : index
    %3 = vector.load %arg4[%c0_3, %c0_4] : memref<1x128xf32, #tpu.memory_space<vmem>>, vector<1x128xf32>
    %4 = vector.broadcast %3 : vector<1x128xf32> to vector<16x128xf32>
    %5 = arith.addf %2, %4 : vector<16x128xf32>
    %cst_5 = arith.constant 0.000000e+00 : f32
    %6 = vector.broadcast %cst_5 : f32 to vector<16x128xf32>
    %7 = arith.maximumf %5, %6 : vector<16x128xf32>
    %8 = arith.truncf %7 : vector<16x128xf32> to vector<16x128xbf16>
    %c0_6 = arith.constant 0 : index
    %c0_7 = arith.constant 0 : index
    %9 = vector.load %arg5[%c0_6, %c0_7] : memref<128x128xbf16, #tpu.memory_space<vmem>>, vector<128x128xbf16>
    %cst_8 = arith.constant dense<0.000000e+00> : vector<16x128xf32>
    %10 = tpu.matmul %8, %9, %cst_8 {dimension_numbers = #tpu.dot_dimension_numbers<[1], [0], [0], [1], [0, 0, 1, 1], [], []>} : vector<16x128xbf16>, vector<128x128xbf16>, vector<16x128xf32> -> vector<16x128xf32>
    %c0_i32 = arith.constant 0 : i32
    %11 = arith.cmpi eq, %arg1, %c0_i32 : i32
    %12 = arith.extui %11 : i1 to i32
    %c0_i32_9 = arith.constant 0 : i32
    %13 = arith.cmpi ne, %12, %c0_i32_9 : i32
    scf.if %13 {
      %c0_12 = arith.constant 0 : index
      %c0_13 = arith.constant 0 : index
      %17 = vector.load %arg6[%c0_12, %c0_13] : memref<1x128xf32, #tpu.memory_space<vmem>>, vector<1x128xf32>
      %18 = vector.broadcast %17 : vector<1x128xf32> to vector<16x128xf32>
      %19 = arith.addf %10, %18 : vector<16x128xf32>
      %c0_14 = arith.constant 0 : index
      %c0_15 = arith.constant 0 : index
      %20 = vector.load %arg7[%c0_14, %c0_15] : memref<16x128xf32, #tpu.memory_space<vmem>>, vector<16x128xf32>
      tpu.vector_store %arg7[%c0_14, %c0_15], %19 {strides = array<i32>} : memref<16x128xf32, #tpu.memory_space<vmem>>, vector<16x128xf32>,
    } else {
    }
    %c0_i32_10 = arith.constant 0 : i32
    %14 = arith.cmpi ne, %arg1, %c0_i32_10 : i32
    %15 = arith.extui %14 : i1 to i32
    %c0_i32_11 = arith.constant 0 : i32
    %16 = arith.cmpi ne, %15, %c0_i32_11 : i32
    scf.if %16 {
      %c0_12 = arith.constant 0 : index
      %c0_13 = arith.constant 0 : index
      %17 = vector.load %arg7[%c0_12, %c0_13] : memref<16x128xf32, #tpu.memory_space<vmem>>, vector<16x128xf32>
      %18 = arith.addf %17, %10 : vector<16x128xf32>
      %c0_14 = arith.constant 0 : index
      %c0_15 = arith.constant 0 : index
      %19 = vector.load %arg7[%c0_14, %c0_15] : memref<16x128xf32, #tpu.memory_space<vmem>>, vector<16x128xf32>
      tpu.vector_store %arg7[%c0_14, %c0_15], %18 {strides = array<i32>} : memref<16x128xf32, #tpu.memory_space<vmem>>, vector<16x128xf32>,
    } else {
    }
    return
  }
  func.func @transform_0(%arg0: i32, %arg1: i32) -> (i32, i32) {
    %c0_i32 = arith.constant 0 : i32
    %c0_i32_0 = arith.constant 0 : i32
    return %arg0, %c0_i32 : i32, i32
  }
  func.func @transform_1(%arg0: i32, %arg1: i32) -> (i32, i32) {
    %c0_i32 = arith.constant 0 : i32
    %c0_i32_0 = arith.constant 0 : i32
    return %c0_i32, %arg1 : i32, i32
  }
  func.func @transform_2(%arg0: i32, %arg1: i32) -> (i32, i32) {
    %c0_i32 = arith.constant 0 : i32
    %c0_i32_0 = arith.constant 0 : i32
    return %c0_i32, %arg1 : i32, i32
  }
  func.func @transform_3(%arg0: i32, %arg1: i32) -> (i32, i32) {
    %c0_i32 = arith.constant 0 : i32
    %c0_i32_0 = arith.constant 0 : i32
    return %arg1, %c0_i32 : i32, i32
  }
  func.func @transform_4(%arg0: i32, %arg1: i32) -> (i32, i32) {
    %c0_i32 = arith.constant 0 : i32
    %c0_i32_0 = arith.constant 0 : i32
    %c0_i32_1 = arith.constant 0 : i32
    return %c0_i32, %c0_i32_0 : i32, i32
  }
  func.func @transform_5(%arg0: i32, %arg1: i32) -> (i32, i32) {
    %c0_i32 = arith.constant 0 : i32
    %c0_i32_0 = arith.constant 0 : i32
    return %arg0, %c0_i32 : i32, i32
  }
}

</mosaic_0001>

<llo_original>
// kernel: tpu_custom_call.1
$region0: #{tpu_custom_call.1}
  #allocation0 [shape = 'u32[]', space=smem, size = 0x4, offset = 0x4, fixed_abs, tag = 'smem constant byte address 0x4 - core index']
  #allocation1 [shape = 'u32[72,128]{1,0:T(1,128)}', space=vmem, size = 0x9000, scoped, tag = 'internal scratch']
  %s0 = inlined_call_operand.hbm [shape: bf16[16,128], index: 0, kind: input, shape index: {}]
  %s1 = inlined_call_operand.hbm [shape: bf16[128,256], index: 1, kind: input, shape index: {}]
  %s2 = inlined_call_operand.hbm [shape: f32[1,256], index: 2, kind: input, shape index: {}]
  %s3 = inlined_call_operand.hbm [shape: bf16[256,128], index: 3, kind: input, shape index: {}]
  %s4 = inlined_call_operand.vmem [shape: f32[1,128], index: 4, kind: input, shape index: {}]
  %s5 = inlined_call_operand.hbm [shape: f32[16,128], index: 5, kind: output, shape index: {}]
  %s6 = sld [smem:[#allocation0]]
  $region77: #{tpu_custom_call.1} parent=0
    _
  %s8 = ssub.s32 1, %s6
  %s9 = scalar_select 0, %s8, %s6
  $region1: #{tpu_custom_call.1} parent=0
    #allocation2 [shape = 'u8[4096]{0}', space=vmem, size = 0x1000, scoped, tag = 'input window, operand 0, single buffered']
    #allocation3 [shape = 's32[2]{0}', space=sflag, size = 0x8, scoped, tag = 'scoped memory for tpu_custom_call.1']
    #allocation4 [shape = 's32[2]{0}', space=sflag, size = 0x8, scoped, tag = 'scoped memory for tpu_custom_call.1']
    #allocation5 [shape = 'u8[65536]{0}', space=vmem, size = 0x10000, scoped, tag = 'input window, operand 1']
    #allocation6 [shape = 's32[2]{0}', space=sflag, size = 0x8, scoped, tag = 'scoped memory for tpu_custom_call.1']
    #allocation7 [shape = 'u8[1024]{0}', space=vmem, size = 0x400, scoped, tag = 'input window, operand 2']
    #allocation8 [shape = 'u8[65536]{0}', space=vmem, size = 0x10000, scoped, tag = 'input window, operand 3']
    #allocation9 [shape = 's32[2]{0}', space=sflag, size = 0x8, scoped, tag = 'scoped memory for tpu_custom_call.1']
    #allocation10 [shape = 'u8[8192]{0}', space=vmem, size = 0x2000, scoped, tag = 'output window, operand 0, single buffered']
    %10 = vsyncpa [#allocation3], 0
    %11 = vsyncpa [#allocation6], 0
    %s12 = scalar_lea.sflag [#allocation6], 1
    %13 = vsyncpa %s12, 0
    %14 = vsyncpa [#allocation9], 0
    %s15 = scalar_lea.sflag [#allocation9], 1
    %16 = vsyncpa %s15, 0
    %17 = vsyncpa [#allocation4], 0
    loop: start=0, step=1, limit=4
    $region2: #{tpu_custom_call.1} parent=1 // loop_pre_header
      _
    $region3: #{tpu_custom_call.1} parent=1 // loop_header
      %s19 = sphi 0, %s23
      %p20 = scmp.ge.s32.totalorder %s19, 4
      %s26 = sphi 0, %s38
      %s27 = sphi 0, %s34
      %s28 = sphi 0, %s26
      %s29 = sphi 0, %s27
      %s30 = sphi 0, %s28
      %s31 = sphi 0, %s29
      %s41 = sphi 0, %s43
      %s44 = sphi 0, %s41
      %s45 = sphi 0, %s44
      %s61 = sphi 0, %s45
      %s67 = sphi 0, %s69
      %s70 = sphi 0, %s67
      %s71 = sphi 0, %s70
      %s87 = sphi 0, %s71
      %s93 = sphi 0, %s95
      %s96 = sphi 0, %s93
      %s97 = sphi 0, %s96
      %s113 = sphi 0, %s97
      %s119 = sphi 0, %s121
      %s122 = sphi 0, %s119
      %s123 = sphi 0, %s122
      %s139 = sphi 0, %s123
      %s143 = sphi 0, %s143
      %s145 = sphi 0, %s143
      %s146 = sphi 0, %s145
      %s160 = sphi 0, %s146
      %s166 = sphi 0, %s168
      %s169 = sphi 0, %s166
      %s170 = sphi 0, %s169
      %s186 = sphi 0, %s170
    $region4: #{tpu_custom_call.1} parent=1 // loop_header_branch
      %22 = sbr.rel (%p20) target = $region8
    $region5: #{tpu_custom_call.1} parent=1 // loop_body
      %s24 = ssub.s32 %s19, 1
      %s25 = ssub.s32 %s19, 2
      %s32 = sadd.s32 1, %s27
      %p33 = scmp.ge.s32.totalorder %s32, 2
      %s34 = scalar_select %p33, 0, %s32
      %s35 = sadd.s32 1, %s26
      %s36 = scalar_select %p33, %s35, %s26
      %p37 = scmp.ge.s32.totalorder %s36, 1
      %s38 = scalar_select %p37, 0, %s36
      %s39 = ssub.s32 %s26, %s38
      %p40 = scmp.eq.s32.totalorder %s39, 0
      %s42 = sadd.s32 %s41, 1
      %s43 = scalar_select %p40, %s41, %s42
      %p46 = pneg %p40
      %p47 = scmp.eq.s32.totalorder %s19, 1
      %p48 = por %p46, %p47
      %p49 = scmp.ne.s32.totalorder %s41, %s44
      %p50 = scmp.eq.s32.totalorder %s19, 0
      %p51 = por %p49, %p50
      %p52 = scmp.ne.s32.totalorder %s41, %s44
      %p53 = scmp.eq.s32.totalorder %s24, 1
      %p54 = por %p52, %p53
      %p55 = scmp.ne.s32.totalorder %s44, %s45
      %p56 = scmp.eq.s32.totalorder %s24, 0
      %p57 = por %p55, %p56
      %p58 = scmp.ne.s32.totalorder %s44, %s45
      %p59 = scmp.eq.s32.totalorder %s25, 1
      %p60 = por %p58, %p59
      %p62 = scmp.ne.s32.totalorder %s45, %s61
      %p63 = scmp.eq.s32.totalorder %s25, 0
      %p64 = por %p62, %p63
      %s65 = ssub.s32 %s27, %s34
      %p66 = scmp.eq.s32.totalorder %s65, 0
      %s68 = sadd.s32 %s67, 1
      %s69 = scalar_select %p66, %s67, %s68
      %p72 = pneg %p66
      %p73 = scmp.eq.s32.totalorder %s19, 1
      %p74 = por %p72, %p73
      %p75 = scmp.ne.s32.totalorder %s67, %s70
      %p76 = scmp.eq.s32.totalorder %s19, 0
      %p77 = por %p75, %p76
      %p78 = scmp.ne.s32.totalorder %s67, %s70
      %p79 = scmp.eq.s32.totalorder %s24, 1
      %p80 = por %p78, %p79
      %p81 = scmp.ne.s32.totalorder %s70, %s71
      %p82 = scmp.eq.s32.totalorder %s24, 0
      %p83 = por %p81, %p82
      %p84 = scmp.ne.s32.totalorder %s70, %s71
      %p85 = scmp.eq.s32.totalorder %s25, 1
      %p86 = por %p84, %p85
      %p88 = scmp.ne.s32.totalorder %s71, %s87
      %p89 = scmp.eq.s32.totalorder %s25, 0
      %p90 = por %p88, %p89
      %s91 = ssub.s32 %s27, %s34
      %p92 = scmp.eq.s32.totalorder %s91, 0
      %s94 = sadd.s32 %s93, 1
      %s95 = scalar_select %p92, %s93, %s94
      %p98 = pneg %p92
      %p99 = scmp.eq.s32.totalorder %s19, 1
      %p100 = por %p98, %p99
      %p101 = scmp.ne.s32.totalorder %s93, %s96
      %p102 = scmp.eq.s32.totalorder %s19, 0
      %p103 = por %p101, %p102
      %p104 = scmp.ne.s32.totalorder %s93, %s96
      %p105 = scmp.eq.s32.totalorder %s24, 1
      %p106 = por %p104, %p105
      %p107 = scmp.ne.s32.totalorder %s96, %s97
      %p108 = scmp.eq.s32.totalorder %s24, 0
      %p109 = por %p107, %p108
      %p110 = scmp.ne.s32.totalorder %s96, %s97
      %p111 = scmp.eq.s32.totalorder %s25, 1
      %p112 = por %p110, %p111
      %p114 = scmp.ne.s32.totalorder %s97, %s113
      %p115 = scmp.eq.s32.totalorder %s25, 0
      %p116 = por %p114, %p115
      %s117 = ssub.s32 %s27, %s34
      %p118 = scmp.eq.s32.totalorder %s117, 0
      %s120 = sadd.s32 %s119, 1
      %s121 = scalar_select %p118, %s119, %s120
      %p124 = pneg %p118
      %p125 = scmp.eq.s32.totalorder %s19, 1
      %p126 = por %p124, %p125
      %p127 = scmp.ne.s32.totalorder %s119, %s122
      %p128 = scmp.eq.s32.totalorder %s19, 0
      %p129 = por %p127, %p128
      %p130 = scmp.ne.s32.totalorder %s119, %s122
      %p131 = scmp.eq.s32.totalorder %s24, 1
      %p132 = por %p130, %p131
      %p133 = scmp.ne.s32.totalorder %s122, %s123
      %p134 = scmp.eq.s32.totalorder %s24, 0
      %p135 = por %p133, %p134
      %p136 = scmp.ne.s32.totalorder %s122, %s123
      %p137 = scmp.eq.s32.totalorder %s25, 1
      %p138 = por %p136, %p137
      %p140 = scmp.ne.s32.totalorder %s123, %s139
      %p141 = scmp.eq.s32.totalorder %s25, 0
      %p142 = por %p140, %p141
      %s144 = sadd.s32 %s143, 1
      %p147 = scmp.eq.s32.totalorder %s19, 1
      %p148 = scmp.ne.s32.totalorder %s143, %s145
      %p149 = scmp.eq.s32.totalorder %s19, 0
      %p150 = por %p148, %p149
      %p151 = scmp.ne.s32.totalorder %s143, %s145
      %p152 = scmp.eq.s32.totalorder %s24, 1
      %p153 = por %p151, %p152
      %p154 = scmp.ne.s32.totalorder %s145, %s146
      %p155 = scmp.eq.s32.totalorder %s24, 0
      %p156 = por %p154, %p155
      %p157 = scmp.ne.s32.totalorder %s145, %s146
      %p158 = scmp.eq.s32.totalorder %s25, 1
      %p159 = por %p157, %p158
      %p161 = scmp.ne.s32.totalorder %s146, %s160
      %p162 = scmp.eq.s32.totalorder %s25, 0
      %p163 = por %p161, %p162
      %s164 = ssub.s32 %s26, %s38
      %p165 = scmp.eq.s32.totalorder %s164, 0
      %s167 = sadd.s32 %s166, 1
      %s168 = scalar_select %p165, %s166, %s167
      %p171 = pneg %p165
      %p172 = scmp.eq.s32.totalorder %s19, 1
      %p173 = por %p171, %p172
      %p174 = scmp.ne.s32.totalorder %s166, %s169
      %p175 = scmp.eq.s32.totalorder %s19, 0
      %p176 = por %p174, %p175
      %p177 = scmp.ne.s32.totalorder %s166, %s169
      %p178 = scmp.eq.s32.totalorder %s24, 1
      %p179 = por %p177, %p178
      %p180 = scmp.ne.s32.totalorder %s169, %s170
      %p181 = scmp.eq.s32.totalorder %s24, 0
      %p182 = por %p180, %p181
      %p183 = scmp.ne.s32.totalorder %s169, %s170
      %p184 = scmp.eq.s32.totalorder %s25, 1
      %p185 = por %p183, %p184
      %p187 = scmp.ne.s32.totalorder %s170, %s186
      %p188 = scmp.eq.s32.totalorder %s25, 0
      %p189 = por %p187, %p188
      %p190 = scmp.le.s32.totalorder 1, %s19
      %p191 = scmp.lt.s32.totalorder %s19, 3
      %p192 = pnand %p190, %p191
      %p193 = pneg %p192
      // Predicated region
      $region9: #{tpu_custom_call.1} parent=5 // pred_check
        _
      $region10: #{tpu_custom_call.1} parent=5 // pred_check_branch
        %195 = sbr.rel (%p192) target = $region12
      $region11: #{tpu_custom_call.1} parent=5 // pred_region
        %s196 = ssub.s32 %s19, 1
        // Predicated region
        $region13: #{tpu_custom_call.1} parent=11 // pred_check
          %p197 = pneg %p57
        $region14: #{tpu_custom_call.1} parent=11 // pred_check_branch
          %199 = sbr.rel (%p197) target = $region16
        $region15: #{tpu_custom_call.1} parent=11 // pred_region
          %s200 = smul.u32 2, %s28
          %202 = vsyncadd [#allocation3], 0
          %s203 = smul.addr %s200, 4
          %s204 = scalar_lea.hbm %s0, %s203
          %s205 = sshll.u32 %s204, 4
          %s206 = int_to_ptr.hbm [resolvable:$true] %s205
          %s207 = sshll.u32 [#allocation2], 4
          %s208 = int_to_ptr.vmem [resolvable:$true] %s207
          %213 = dma.hbm_to_vmem [thread:$0]  %s206, 128, %s208, [#allocation3], 64, 64, 4
        $region16: #{tpu_custom_call.1} parent=11 // pred_fallthru
          _
        // Predicated region
        $region17: #{tpu_custom_call.1} parent=11 // pred_check
          %p214 = pneg %p156
        $region18: #{tpu_custom_call.1} parent=11 // pred_check_branch
          %216 = sbr.rel (%p214) target = $region20
        $region19: #{tpu_custom_call.1} parent=11 // pred_region
          _
        $region20: #{tpu_custom_call.1} parent=11 // pred_fallthru
          _
      $region12: #{tpu_custom_call.1} parent=5 // pred_fallthru
        _
      %p217 = scmp.lt.s32.totalorder %s19, 2
      // Predicated region
      $region21: #{tpu_custom_call.1} parent=5 // pred_check
        %p218 = pneg %p217
      $region22: #{tpu_custom_call.1} parent=5 // pred_check_branch
        %220 = sbr.rel (%p218) target = $region24
      $region23: #{tpu_custom_call.1} parent=5 // pred_region
        // Predicated region
        $region25: #{tpu_custom_call.1} parent=23 // pred_check
          %p221 = pneg %p77
        $region26: #{tpu_custom_call.1} parent=23 // pred_check_branch
          %223 = sbr.rel (%p221) target = $region28
        $region27: #{tpu_custom_call.1} parent=23 // pred_region
          %s224 = sand.u32 %s19, 1
          %s225 = scalar_lea.sflag [#allocation6], %s224
          %s226 = sand.u32 %s67, 1
          %s227 = smul.addr %s226, 64
          %s228 = scalar_lea.vmem [#allocation5], %s227
          %230 = vsyncadd %s225, 0
          %s231 = smul.addr %s27, 4
          %s232 = scalar_lea.hbm %s1, %s231
          %s233 = sshll.u32 %s232, 4
          %s234 = int_to_ptr.hbm [resolvable:$true] %s233
          %s235 = sshll.u32 %s228, 4
          %s236 = int_to_ptr.vmem [resolvable:$true] %s235
          %241 = dma.hbm_to_vmem [thread:$0]  %s234, 1024, %s236, %s225, 128, 64, 4
        $region28: #{tpu_custom_call.1} parent=23 // pred_fallthru
          _
        // Predicated region
        $region29: #{tpu_custom_call.1} parent=23 // pred_check
          %p242 = pneg %p103
        $region30: #{tpu_custom_call.1} parent=23 // pred_check_branch
          %244 = sbr.rel (%p242) target = $region32
        $region31: #{tpu_custom_call.1} parent=23 // pred_region
          %s245 = sand.u32 %s19, 1
          %s246 = scalar_lea.sflag [#allocation6], %s245
          %s247 = sand.u32 %s93, 1
          %s248 = scalar_lea.vmem [#allocation7], %s247
          %250 = vsyncadd %s246, 0
          %s251 = scalar_lea.hbm %s2, %s27
          %s253 = sshll.u32 %s251, 4
          %s254 = int_to_ptr.hbm [resolvable:$true] %s253
          %s255 = sshll.u32 %s248, 4
          %s256 = int_to_ptr.vmem [resolvable:$true] %s255
          %258 = dma.hbm_to_vmem [thread:$0]  %s254, 16, %s256, %s246
        $region32: #{tpu_custom_call.1} parent=23 // pred_fallthru
          _
        // Predicated region
        $region33: #{tpu_custom_call.1} parent=23 // pred_check
          %p259 = pneg %p129
        $region34: #{tpu_custom_call.1} parent=23 // pred_check_branch
          %261 = sbr.rel (%p259) target = $region36
        $region35: #{tpu_custom_call.1} parent=23 // pred_region
          %s262 = sand.u32 %s119, 1
          %s263 = scalar_lea.sflag [#allocation9], %s262
          %s264 = sand.u32 %s119, 1
          %s265 = smul.addr %s264, 64
          %s266 = scalar_lea.vmem [#allocation8], %s265
          %s267 = smul.u32 16, %s27
          %269 = vsyncadd %s263, 0
          %s270 = smul.addr %s267, 4
          %s271 = scalar_lea.hbm %s3, %s270
          %s272 = sshll.u32 %s271, 4
          %s273 = int_to_ptr.hbm [resolvable:$true] %s272
          %s274 = sshll.u32 %s266, 4
          %s275 = int_to_ptr.vmem [resolvable:$true] %s274
          %280 = dma.hbm_to_vmem [thread:$0]  %s273, 1024, %s275, %s263, 64, 64, 4
        $region36: #{tpu_custom_call.1} parent=23 // pred_fallthru
          _
      $region24: #{tpu_custom_call.1} parent=5 // pred_fallthru
        _
      %p281 = scmp.le.s32.totalorder 1, %s19
      %p282 = scmp.lt.s32.totalorder %s19, 3
      %p283 = pnand %p281, %p282
      %p284 = pneg %p283
      // Predicated region
      $region37: #{tpu_custom_call.1} parent=5 // pred_check
        _
      $region38: #{tpu_custom_call.1} parent=5 // pred_check_branch
        %286 = sbr.rel (%p283) target = $region40
      $region39: #{tpu_custom_call.1} parent=5 // pred_region
        %s287 = ssub.s32 %s19, 1
        // Predicated region
        $region41: #{tpu_custom_call.1} parent=39 // pred_check
          %p288 = pneg %p57
        $region42: #{tpu_custom_call.1} parent=39 // pred_check_branch
          %290 = sbr.rel (%p288) target = $region44
        $region43: #{tpu_custom_call.1} parent=39 // pred_region
          %292 = dma.done [#allocation3], 128
        $region44: #{tpu_custom_call.1} parent=39 // pred_fallthru
          _
        %s293 = sand.u32 %s24, 1
        %s294 = scalar_lea.sflag [#allocation6], %s293
        %s295 = sand.u32 %s70, 1
        %s296 = smul.addr %s295, 64
        %s297 = scalar_lea.vmem [#allocation5], %s296
        // Predicated region
        $region45: #{tpu_custom_call.1} parent=39 // pred_check
          %p298 = pneg %p83
        $region46: #{tpu_custom_call.1} parent=39 // pred_check_branch
          %300 = sbr.rel (%p298) target = $region48
        $region47: #{tpu_custom_call.1} parent=39 // pred_region
          %302 = dma.done %s294, 1024
        $region48: #{tpu_custom_call.1} parent=39 // pred_fallthru
          _
        %s303 = sand.u32 %s24, 1
        %s304 = scalar_lea.sflag [#allocation6], %s303
        %s305 = sand.u32 %s96, 1
        %s306 = scalar_lea.vmem [#allocation7], %s305
        // Predicated region
        $region49: #{tpu_custom_call.1} parent=39 // pred_check
          %p307 = pneg %p109
        $region50: #{tpu_custom_call.1} parent=39 // pred_check_branch
          %309 = sbr.rel (%p307) target = $region52
        $region51: #{tpu_custom_call.1} parent=39 // pred_region
          %311 = dma.done %s304, 16
        $region52: #{tpu_custom_call.1} parent=39 // pred_fallthru
          _
        %s312 = sand.u32 %s122, 1
        %s313 = scalar_lea.sflag [#allocation9], %s312
        %s314 = sand.u32 %s122, 1
        %s315 = smul.addr %s314, 64
        %s316 = scalar_lea.vmem [#allocation8], %s315
        // Predicated region
        $region53: #{tpu_custom_call.1} parent=39 // pred_check
          %p317 = pneg %p135
        $region54: #{tpu_custom_call.1} parent=39 // pred_check_branch
          %319 = sbr.rel (%p317) target = $region56
        $region55: #{tpu_custom_call.1} parent=39 // pred_region
          %321 = dma.done %s313, 1024
        $region56: #{tpu_custom_call.1} parent=39 // pred_fallthru
          _
        %p322 = pneg %p57
        %p323 = pneg %p54
        %s324 = sand.u32 %s24, 1
        %s325 = scalar_lea.sflag [#allocation6], %s324
        %s326 = sand.u32 %s70, 1
        %s327 = smul.addr %s326, 64
        %s328 = scalar_lea.vmem [#allocation5], %s327
        %p329 = pneg %p83
        %p330 = pneg %p80
        %s331 = sand.u32 %s24, 1
        %s332 = scalar_lea.sflag [#allocation6], %s331
        %s333 = sand.u32 %s96, 1
        %s334 = scalar_lea.vmem [#allocation7], %s333
        %p335 = pneg %p109
        %p336 = pneg %p106
        %s337 = sand.u32 %s122, 1
        %s338 = scalar_lea.sflag [#allocation9], %s337
        %s339 = sand.u32 %s122, 1
        %s340 = smul.addr %s339, 64
        %s341 = scalar_lea.vmem [#allocation8], %s340
        %p342 = pneg %p135
        %p343 = pneg %p132
        %p344 = pneg %p156
        %p345 = pneg %p153
        %p346 = pneg %p182
        %p347 = pneg %p179
        %s348 = smul.u32 2, %s28
        %s349 = smul.u32 16, %s29
        %s350 = smul.u32 2, %s28
        %v351 = vld [vmem:[#allocation2] sm:$0xf]
        %v352 = vld [vmem:[#allocation2 + $0x4] sm:$0xf]
        %v353 = vld [vmem:[%s297] sm:$0xf]
        %v354 = vld [vmem:[%s297 + $0x4] sm:$0xf]
        %v355 = vld [vmem:[%s297 + $0x8] sm:$0xf]
        %v356 = vld [vmem:[%s297 + $0xc] sm:$0xf]
        %v357 = vld [vmem:[%s297 + $0x10] sm:$0xf]
        %v358 = vld [vmem:[%s297 + $0x14] sm:$0xf]
        %v359 = vld [vmem:[%s297 + $0x18] sm:$0xf]
        %v360 = vld [vmem:[%s297 + $0x1c] sm:$0xf]
        %v361 = vld [vmem:[%s297 + $0x20] sm:$0xf]
        %v362 = vld [vmem:[%s297 + $0x24] sm:$0xf]
        %v363 = vld [vmem:[%s297 + $0x28] sm:$0xf]
        %v364 = vld [vmem:[%s297 + $0x2c] sm:$0xf]
        %v365 = vld [vmem:[%s297 + $0x30] sm:$0xf]
        %v366 = vld [vmem:[%s297 + $0x34] sm:$0xf]
        %v367 = vld [vmem:[%s297 + $0x38] sm:$0xf]
        %v368 = vld [vmem:[%s297 + $0x3c] sm:$0xf]
        %v369 = vld [vmem:[%s306] sm:$0x1]
        %v371 = vperm.slane %v369, 0
        %v375 = vunpack.c.l.b16 %v351
        %v376 = vunpack.c.l.b16 %v352
        %v377 = vpack.c.b16 %v376, %v375
        %v395 = vunpack.c.l.b16 %v353
        %v396 = vunpack.c.l.b16 %v354
        %v397 = vunpack.c.l.b16 %v355
        %v398 = vunpack.c.l.b16 %v356
        %v399 = vunpack.c.l.b16 %v357
        %v400 = vunpack.c.l.b16 %v358
        %v401 = vunpack.c.l.b16 %v359
        %v402 = vunpack.c.l.b16 %v360
        %v403 = vunpack.c.l.b16 %v361
        %v404 = vunpack.c.l.b16 %v362
        %v405 = vunpack.c.l.b16 %v363
        %v406 = vunpack.c.l.b16 %v364
        %v407 = vunpack.c.l.b16 %v365
        %v408 = vunpack.c.l.b16 %v366
        %v409 = vunpack.c.l.b16 %v367
        %v410 = vunpack.c.l.b16 %v368
        %v411 = vpack.c.b16 %v396, %v395
        %v412 = vpack.c.b16 %v398, %v397
        %v413 = vpack.c.b16 %v400, %v399
        %v414 = vpack.c.b16 %v402, %v401
        %v415 = vpack.c.b16 %v404, %v403
        %v416 = vpack.c.b16 %v406, %v405
        %v417 = vpack.c.b16 %v408, %v407
        %v418 = vpack.c.b16 %v410, %v409
        %427 = vmatpush.bf16.msra.mxu0 %v418
        %428 = vmatpush.bf16.msra.mxu0 %v417
        %429 = vmatpush.bf16.msra.mxu0 %v416
        %430 = vmatpush.bf16.msra.mxu0 %v415
        %431 = vmatpush.bf16.msra.mxu0 %v414
        %432 = vmatpush.bf16.msra.mxu0 %v413
        %433 = vmatpush.bf16.msra.mxu0 %v412
        %434 = vmatpush.bf16.msra.mxu0 %v411
        %435 = vmatmul.bf16.gmra.mxu0 %v377
        %v436 = vpop.f32.mrf.mxu0
        %v437 = vadd.f32 %v371, %v436
        %v438 = vpop.f32.mrf.mxu0
        %v439 = vadd.f32 %v371, %v438
        %440 = vdwg.mxu0
        %v441 = vmax.f32 %v437, 0.0
        %v442 = vmax.f32 %v439, 0.0
        %v443 = vpack.c.bf16 %v442, %v441
        %v444 = vld [vmem:[%s316] sm:$0xf]
        %v445 = vld [vmem:[%s316 + $0x4] sm:$0xf]
        %v446 = vld [vmem:[%s316 + $0x8] sm:$0xf]
        %v447 = vld [vmem:[%s316 + $0xc] sm:$0xf]
        %v448 = vld [vmem:[%s316 + $0x10] sm:$0xf]
        %v449 = vld [vmem:[%s316 + $0x14] sm:$0xf]
        %v450 = vld [vmem:[%s316 + $0x18] sm:$0xf]
        %v451 = vld [vmem:[%s316 + $0x1c] sm:$0xf]
        %v452 = vld [vmem:[%s316 + $0x20] sm:$0xf]
        %v453 = vld [vmem:[%s316 + $0x24] sm:$0xf]
        %v454 = vld [vmem:[%s316 + $0x28] sm:$0xf]
        %v455 = vld [vmem:[%s316 + $0x2c] sm:$0xf]
        %v456 = vld [vmem:[%s316 + $0x30] sm:$0xf]
        %v457 = vld [vmem:[%s316 + $0x34] sm:$0xf]
        %v458 = vld [vmem:[%s316 + $0x38] sm:$0xf]
        %v459 = vld [vmem:[%s316 + $0x3c] sm:$0xf]
        %v476 = vunpack.c.l.b16 %v444
        %v477 = vunpack.c.l.b16 %v445
        %v478 = vunpack.c.l.b16 %v446
        %v479 = vunpack.c.l.b16 %v447
        %v480 = vunpack.c.l.b16 %v448
        %v481 = vunpack.c.l.b16 %v449
        %v482 = vunpack.c.l.b16 %v450
        %v483 = vunpack.c.l.b16 %v451
        %v484 = vunpack.c.l.b16 %v452
        %v485 = vunpack.c.l.b16 %v453
        %v486 = vunpack.c.l.b16 %v454
        %v487 = vunpack.c.l.b16 %v455
        %v488 = vunpack.c.l.b16 %v456
        %v489 = vunpack.c.l.b16 %v457
        %v490 = vunpack.c.l.b16 %v458
        %v491 = vunpack.c.l.b16 %v459
        %v492 = vpack.c.b16 %v477, %v476
        %v493 = vpack.c.b16 %v479, %v478
        %v494 = vpack.c.b16 %v481, %v480
        %v495 = vpack.c.b16 %v483, %v482
        %v496 = vpack.c.b16 %v485, %v484
        %v497 = vpack.c.b16 %v487, %v486
        %v498 = vpack.c.b16 %v489, %v488
        %v499 = vpack.c.b16 %v491, %v490
        %508 = vmatpush.bf16.msra.mxu0 %v499
        %509 = vmatpush.bf16.msra.mxu0 %v498
        %510 = vmatpush.bf16.msra.mxu0 %v497
        %511 = vmatpush.bf16.msra.mxu0 %v496
        %512 = vmatpush.bf16.msra.mxu0 %v495
        %513 = vmatpush.bf16.msra.mxu0 %v494
        %514 = vmatpush.bf16.msra.mxu0 %v493
        %515 = vmatpush.bf16.msra.mxu0 %v492
        %516 = vmatmul.bf16.gmra.mxu0 %v443
        %v517 = vpop.f32.mrf.mxu0
        %v518 = vadd.f32 0.0, %v517
        %v519 = vpop.f32.mrf.mxu0
        %v520 = vadd.f32 0.0, %v519
        %521 = vdwg.mxu0
        %p522 = scmp.eq.s32.totalorder %s29, 0
        // Predicated region
        $region57: #{tpu_custom_call.1} parent=39 // pred_check
          %p523 = pneg %p522
        $region58: #{tpu_custom_call.1} parent=39 // pred_check_branch
          %525 = sbr.rel (%p523) target = $region60
        $region59: #{tpu_custom_call.1} parent=39 // pred_region
          %v526 = vld [vmem:[%s4] sm:$0x1]
          %v528 = vperm.slane %v526, 0
          %v530 = vadd.f32 %v518, %v528
          %v531 = vadd.f32 %v520, %v528
          %532 = vst [vmem:[#allocation10] sm:$0xff] %v530
          %533 = vst [vmem:[#allocation10 + $0x8] sm:$0xff] %v531
        $region60: #{tpu_custom_call.1} parent=39 // pred_fallthru
          _
        %p534 = scmp.ne.s32.totalorder %s29, 0
        // Predicated region
        $region61: #{tpu_custom_call.1} parent=39 // pred_check
          %p535 = pneg %p534
        $region62: #{tpu_custom_call.1} parent=39 // pred_check_branch
          %537 = sbr.rel (%p535) target = $region64
        $region63: #{tpu_custom_call.1} parent=39 // pred_region
          %v538 = vld [vmem:[#allocation10] sm:$0xff]
          %v539 = vld [vmem:[#allocation10 + $0x8] sm:$0xff]
          %v540 = vadd.f32 %v538, %v518
          %v541 = vadd.f32 %v539, %v520
          %542 = vst [vmem:[#allocation10] sm:$0xff] %v540
          %543 = vst [vmem:[#allocation10 + $0x8] sm:$0xff] %v541
        $region64: #{tpu_custom_call.1} parent=39 // pred_fallthru
          _
        // Predicated region
        $region65: #{tpu_custom_call.1} parent=39 // pred_check
          %p544 = pneg %p179
        $region66: #{tpu_custom_call.1} parent=39 // pred_check_branch
          %546 = sbr.rel (%p544) target = $region68
        $region67: #{tpu_custom_call.1} parent=39 // pred_region
          %s547 = smul.u32 2, %s28
          %549 = vsyncadd [#allocation4], 0
          %s550 = smul.addr %s547, 8
          %s551 = scalar_lea.hbm %s5, %s550
          %s552 = sshll.u32 [#allocation10], 4
          %s553 = int_to_ptr.vmem [resolvable:$true] %s552
          %s554 = sshll.u32 %s551, 4
          %s555 = int_to_ptr.hbm [resolvable:$true] %s554
          %560 = dma.vmem_to_hbm [thread:$0]  %s553, 256, %s555, [#allocation4], 128, 128, 8
        $region68: #{tpu_custom_call.1} parent=39 // pred_fallthru
          _
        // Predicated region
        $region69: #{tpu_custom_call.1} parent=39 // pred_check
          %p561 = pneg %p179
        $region70: #{tpu_custom_call.1} parent=39 // pred_check_branch
          %563 = sbr.rel (%p561) target = $region72
        $region71: #{tpu_custom_call.1} parent=39 // pred_region
          %565 = dma.done [#allocation4], 256
        $region72: #{tpu_custom_call.1} parent=39 // pred_fallthru
          _
      $region40: #{tpu_custom_call.1} parent=5 // pred_fallthru
        _
      %p566 = scmp.le.s32.totalorder 2, %s19
      // Predicated region
      $region73: #{tpu_custom_call.1} parent=5 // pred_check
        %p567 = pneg %p566
      $region74: #{tpu_custom_call.1} parent=5 // pred_check_branch
        %569 = sbr.rel (%p567) target = $region76
      $region75: #{tpu_custom_call.1} parent=5 // pred_region
        %s570 = ssub.s32 %s19, 2
      $region76: #{tpu_custom_call.1} parent=5 // pred_fallthru
        _
    $region6: #{tpu_custom_call.1} parent=1 // loop_footer
      %s23 = sadd.s32 1, %s19
    $region7: #{tpu_custom_call.1} parent=1 // loop_footer_branch
      %18 = sbr.rel target = $region3
    $region8: #{tpu_custom_call.1} parent=1 // loop_exit
      _
    %571 = vsyncpa [#allocation3], 1
    %s572 = scalar_lea.sflag [#allocation3], 1
    %573 = vsyncpa %s572, 1
    %574 = vsyncpa [#allocation6], 1
    %s575 = scalar_lea.sflag [#allocation6], 1
    %576 = vsyncpa %s575, 1
    %577 = vsyncpa [#allocation9], 1
    %s578 = scalar_lea.sflag [#allocation9], 1
    %579 = vsyncpa %s578, 1
    %580 = vsyncpa [#allocation4], 1
    %s581 = scalar_lea.sflag [#allocation4], 1
    %582 = vsyncpa %s581, 1

</llo_original>
